<compile_context>
chip_gen: v6e
topology: v6e:2x2x1
jax: 0.10.0
libtpu: 0.0.40
codegen_flags: <defaults>
</compile_context>

<pallas_src>
import jax
import jax.numpy as jnp
from jax.experimental import pallas as pl
from jax.experimental.pallas import tpu as pltpu


_VMEM_LIMIT_BYTES = 48 * 1024 * 1024
_MAX_BLOCK_BYTES = 2 * 1024 * 1024  # per-block cap (input dtype), pre double-buffering


def _pick_tile_hw(hw, cp, itemsize, max_block_bytes=_MAX_BLOCK_BYTES):
    """Largest spatial tile that (a) divides hw, (b) is a multiple of 8, and
    (c) keeps one (1, tile, cp) block under max_block_bytes.  Falls back to the
    full extent (always a legal block shape) when no such divisor exists."""
    if hw * cp * itemsize <= max_block_bytes:
        return hw
    cap = max(8, max_block_bytes // (cp * itemsize))
    cap -= cap % 8
    d = cap
    while d >= 8:
        if hw % d == 0:
            return d
        d -= 8
    # No multiple-of-8 divisor fits the budget; take the smallest one, else full hw.
    for d in range(cap + 8, hw, 8):
        if hw % d == 0:
            return d
    return hw


def _grn_sumsq_kernel(x_ref, o_ref):
    """Pass 1: accumulate per-channel sum of squares (f32) over spatial tiles."""
    @pl.when(pl.program_id(1) == 0)
    def _():
        o_ref[...] = jnp.zeros_like(o_ref)

    x = x_ref[...].astype(jnp.float32)          # (1, tile_hw, Cp) — tile-sized temp only
    o_ref[...] += jnp.sum(x * x, axis=1, keepdims=True)   # (1, 1, Cp)


def _make_apply_kernel(eps, c_real):
    """Pass 2: out = x * (1 + nx * gamma) + beta, in the input dtype."""
    inv_c = 1.0 / float(c_real)

    def kernel(sumsq_ref, gamma_ref, beta_ref, x_ref, o_ref):
        sumsq = sumsq_ref[...]                                   # (1, 1, Cp) f32
        gx = jnp.sqrt(sumsq)                                     # (1, 1, Cp)
        # Padded channels have gx == 0, so sum is exact; divide by the real C.
        denom = jnp.sum(gx, axis=-1, keepdims=True) * inv_c + eps  # (1, 1, 1)
        # One scalar reciprocal, then multiplies (exact: keeps f32 test tolerance).
        nx = gx * pl.reciprocal(denom)                           # (1, 1, Cp)
        scale = 1.0 + nx * gamma_ref[...]                        # (1, 1, Cp) f32
        dt = o_ref.dtype
        o_ref[...] = (x_ref[...] * scale.astype(dt) + beta_ref[...].astype(dt)).astype(dt)

    return kernel


def global_response_norm(x, gamma, beta, eps=1e-6):
    """x: (N, H, W, C) NHWC; gamma, beta: (C,)."""
    N, H, W, C = x.shape
    hw = H * W

    # Lane-dense channel padding (only when the HBM traffic inflation is <= 1.5x).
    cp = C
    if C % 128 != 0:
        cpad = ((C + 127) // 128) * 128
        if 2 * cpad <= 3 * C:
            cp = cpad
    pad_c = cp - C

    x_flat = x.reshape(N, hw, C)
    if pad_c:
        x_flat = jnp.pad(x_flat, ((0, 0), (0, 0), (0, pad_c)))
        gamma_p = jnp.pad(gamma, (0, pad_c))
        beta_p = jnp.pad(beta, (0, pad_c))
    else:
        gamma_p, beta_p = gamma, beta
    gamma3d = gamma_p.reshape(1, 1, cp).astype(jnp.float32)
    beta3d = beta_p.reshape(1, 1, cp).astype(jnp.float32)

    tile_hw = _pick_tile_hw(hw, cp, jnp.dtype(x.dtype).itemsize)
    n_s = hw // tile_hw if hw % tile_hw == 0 else 1
    if n_s == 1:
        tile_hw = hw

    # ---- Pass 1: per-(sample, channel) sum of squares (f32 accumulator). ----
    sumsq = pl.pallas_call(
        _grn_sumsq_kernel,
        out_shape=jax.ShapeDtypeStruct((N, 1, cp), jnp.float32),
        grid_spec=pltpu.PrefetchScalarGridSpec(
            num_scalar_prefetch=0,
            grid=(N, n_s),
            in_specs=[pl.BlockSpec((1, tile_hw, cp), lambda n, s: (n, s, 0))],
            out_specs=pl.BlockSpec((1, 1, cp), lambda n, s: (n, 0, 0)),
        ),
        compiler_params=pltpu.CompilerParams(
            dimension_semantics=("parallel", "arbitrary"),
            vmem_limit_bytes=_VMEM_LIMIT_BYTES,
        ),
    )(x_flat)

    # ---- Pass 2: fused normalize + affine epilogue (fully parallel grid). ----
    out_flat = pl.pallas_call(
        _make_apply_kernel(eps, C),
        out_shape=jax.ShapeDtypeStruct((N, hw, cp), x.dtype),
        grid_spec=pltpu.PrefetchScalarGridSpec(
            num_scalar_prefetch=0,
            grid=(N, n_s),
            in_specs=[
                pl.BlockSpec((1, 1, cp), lambda n, s: (n, 0, 0)),      # sumsq
                pl.BlockSpec((1, 1, cp), lambda n, s: (0, 0, 0)),      # gamma
                pl.BlockSpec((1, 1, cp), lambda n, s: (0, 0, 0)),      # beta
                pl.BlockSpec((1, tile_hw, cp), lambda n, s: (n, s, 0)),  # x
            ],
            out_specs=pl.BlockSpec((1, tile_hw, cp), lambda n, s: (n, s, 0)),
        ),
        compiler_params=pltpu.CompilerParams(
            dimension_semantics=("parallel", "parallel"),
            vmem_limit_bytes=_VMEM_LIMIT_BYTES,
        ),
    )(sumsq, gamma3d, beta3d, x_flat)

    if pad_c:
        out_flat = out_flat[:, :, :C]
    return out_flat.reshape(N, H, W, C)


def _reference(x, gamma, beta, eps=1e-6):
    # Pure-JAX reference mirroring the PyTorch forward exactly (NHWC).
    gx = jnp.sqrt(jnp.sum(x.astype(jnp.float32) ** 2, axis=(1, 2), keepdims=True))
    nx = gx / (jnp.mean(gx, axis=-1, keepdims=True) + eps)
    out = x.astype(jnp.float32) + x.astype(jnp.float32) * nx * gamma + beta
    return out.astype(x.dtype)


if __name__ == "__main__":
    key = jax.random.PRNGKey(0)

    cases = [
        # (N, H, W, C, dtype, atol, rtol) — covers unpadded small-C, padded C=96,
        # lane-aligned C=128, and a bf16 epilogue path.
        (2, 16, 16, 32, jnp.float32, 1e-5, 1e-5),
        (2, 8, 8, 96, jnp.float32, 1e-5, 1e-5),
        (1, 8, 8, 128, jnp.bfloat16, 5e-2, 5e-2),
    ]

    for N, H, W, C, dtype, atol, rtol in cases:
        key, kx, kg, kb = jax.random.split(key, 4)
        x = jax.random.normal(kx, (N, H, W, C), dtype=jnp.float32).astype(dtype)
        # Module __init__ uses zeros(dim); use small random values so the
        # normalization path is actually exercised.
        gamma = jax.random.normal(kg, (C,), dtype=jnp.float32) * 0.1
        beta = jax.random.normal(kb, (C,), dtype=jnp.float32) * 0.1

        out = global_response_norm(x, gamma, beta)
        out = jax.block_until_ready(out)
        ref = _reference(x, gamma, beta)

        assert out.shape == (N, H, W, C)
        assert jnp.allclose(out.astype(jnp.float32), ref.astype(jnp.float32),
                            atol=atol, rtol=rtol), (N, H, W, C, dtype)

    print("KERNEL_OK")
</pallas_src>

<mosaic_0001>
module attributes {stable_mosaic.version = 11 : i64} {
  func.func @_grn_sumsq_kernel(%arg0: i32, %arg1: i32, %arg2: memref<1x256x32xf32, #tpu.memory_space<vmem>>, %arg3: memref<1x1x32xf32, #tpu.memory_space<vmem>>) attributes {dimension_semantics = [#tpu.dimension_semantics<parallel>, #tpu.dimension_semantics<arbitrary>], iteration_bounds = array<i64: 2, 1>, scalar_prefetch = 0 : i64, scratch_operands = 0 : i64, tpu.core_type = #tpu.core_type<tc>, window_params = [{transform_indices = @transform_0, window_bounds = array<i64: 1, 256, 32>}, {transform_indices = @transform_1, window_bounds = array<i64: 1, 1, 32>}]} {
    %c0_i32 = arith.constant 0 : i32
    %0 = arith.cmpi eq, %arg1, %c0_i32 : i32
    %1 = arith.extui %0 : i1 to i32
    %c0_i32_0 = arith.constant 0 : i32
    %2 = arith.cmpi ne, %1, %c0_i32_0 : i32
    scf.if %2 {
      %cst_9 = arith.constant 0.000000e+00 : f32
      %10 = vector.broadcast %cst_9 : f32 to vector<1x1x32xf32>
      %c0_10 = arith.constant 0 : index
      %c0_11 = arith.constant 0 : index
      %c0_12 = arith.constant 0 : index
      %11 = vector.load %arg3[%c0_10, %c0_11, %c0_12] : memref<1x1x32xf32, #tpu.memory_space<vmem>>, vector<1x1x32xf32>
      tpu.vector_store %arg3[%c0_10, %c0_11, %c0_12], %10 {strides = array<i32>} : memref<1x1x32xf32, #tpu.memory_space<vmem>>, vector<1x1x32xf32>,
    } else {
    }
    %c0 = arith.constant 0 : index
    %c0_1 = arith.constant 0 : index
    %c0_2 = arith.constant 0 : index
    %3 = vector.load %arg2[%c0, %c0_1, %c0_2] : memref<1x256x32xf32, #tpu.memory_space<vmem>>, vector<1x256x32xf32>
    %c0_3 = arith.constant 0 : index
    %c0_4 = arith.constant 0 : index
    %c0_5 = arith.constant 0 : index
    %4 = vector.load %arg3[%c0_3, %c0_4, %c0_5] : memref<1x1x32xf32, #tpu.memory_space<vmem>>, vector<1x1x32xf32>
    %5 = arith.mulf %3, %3 : vector<1x256x32xf32>
    %cst = arith.constant dense<0.000000e+00> : vector<1x32xf32>
    %6 = vector.multi_reduction <add>, %5, %cst [1] : vector<1x256x32xf32> to vector<1x32xf32>
    %7 = vector.shape_cast %6 : vector<1x32xf32> to vector<1x1x32xf32>
    %8 = arith.addf %4, %7 : vector<1x1x32xf32>
    %c0_6 = arith.constant 0 : index
    %c0_7 = arith.constant 0 : index
    %c0_8 = arith.constant 0 : index
    %9 = vector.load %arg3[%c0_6, %c0_7, %c0_8] : memref<1x1x32xf32, #tpu.memory_space<vmem>>, vector<1x1x32xf32>
    tpu.vector_store %arg3[%c0_6, %c0_7, %c0_8], %8 {strides = array<i32>} : memref<1x1x32xf32, #tpu.memory_space<vmem>>, vector<1x1x32xf32>,
    return
  }
  func.func @transform_0(%arg0: i32, %arg1: i32) -> (i32, i32, i32) {
    %c0_i32 = arith.constant 0 : i32
    %c0_i32_0 = arith.constant 0 : i32
    return %arg0, %arg1, %c0_i32 : i32, i32, i32
  }
  func.func @transform_1(%arg0: i32, %arg1: i32) -> (i32, i32, i32) {
    %c0_i32 = arith.constant 0 : i32
    %c0_i32_0 = arith.constant 0 : i32
    %c0_i32_1 = arith.constant 0 : i32
    return %arg0, %c0_i32, %c0_i32_0 : i32, i32, i32
  }
}

</mosaic_0001>

<llo_original>
// kernel: tpu_custom_call.1
$region0: #{tpu_custom_call.1}
  #allocation0 [shape = 'u32[]', space=smem, size = 0x4, offset = 0x4, fixed_abs, tag = 'smem constant byte address 0x4 - core index']
  #allocation1 [shape = 'u32[144,128]{1,0:T(1,128)}', space=vmem, size = 0x12000, scoped, tag = 'internal scratch']
  %s0 = inlined_call_operand.vmem [shape: f32[2,256,32], index: 0, kind: input, shape index: {}]
  %s1 = inlined_call_operand.hbm [shape: f32[2,1,32], index: 1, kind: output, shape index: {}]
  %s2 = sld [smem:[#allocation0]]
  $region41: #{tpu_custom_call.1} parent=0
    _
  %s4 = ssub.s32 1, %s2
  %s5 = scalar_select 0, %s4, %s2
  $region1: #{tpu_custom_call.1} parent=0
    #allocation2 [shape = 'u8[1024]{0}', space=vmem, size = 0x400, scoped, tag = 'output window, operand 0']
    #allocation3 [shape = 's32[2]{0}', space=sflag, size = 0x8, scoped, tag = 'scoped memory for tpu_custom_call.1']
    %6 = vsyncpa [#allocation3], 0
    %s7 = scalar_lea.sflag [#allocation3], 1
    %8 = vsyncpa %s7, 0
    loop: start=0, step=1, limit=4
    $region2: #{tpu_custom_call.1} parent=1 // loop_pre_header
      _
    $region3: #{tpu_custom_call.1} parent=1 // loop_header
      %s10 = sphi 0, %s14
      %p11 = scmp.ge.s32.totalorder %s10, 4
      %s17 = sphi 0, %s29
      %s18 = sphi 0, %s25
      %s19 = sphi 0, %s17
      %s20 = sphi 0, %s18
      %s21 = sphi 0, %s19
      %s22 = sphi 0, %s20
      %s34 = sphi 0, %s36
      %s37 = sphi 0, %s34
      %s38 = sphi 0, %s37
      %s54 = sphi 0, %s38
      %s60 = sphi 0, %s62
      %s63 = sphi 0, %s60
      %s64 = sphi 0, %s63
      %s80 = sphi 0, %s64
    $region4: #{tpu_custom_call.1} parent=1 // loop_header_branch
      %13 = sbr.rel (%p11) target = $region8
    $region5: #{tpu_custom_call.1} parent=1 // loop_body
      %s15 = ssub.s32 %s10, 1
      %s16 = ssub.s32 %s10, 2
      %s23 = sadd.s32 1, %s18
      %p24 = scmp.ge.s32.totalorder %s23, 1
      %s25 = scalar_select %p24, 0, %s23
      %s26 = sadd.s32 1, %s17
      %s27 = scalar_select %p24, %s26, %s17
      %p28 = scmp.ge.s32.totalorder %s27, 2
      %s29 = scalar_select %p28, 0, %s27
      %s30 = ssub.s32 %s17, %s29
      %s31 = ssub.s32 %s18, %s25
      %s32 = sor.u32 %s30, %s31
      %p33 = scmp.eq.s32.totalorder %s32, 0
      %s35 = sadd.s32 %s34, 1
      %s36 = scalar_select %p33, %s34, %s35
      %p39 = pneg %p33
      %p40 = scmp.eq.s32.totalorder %s10, 1
      %p41 = por %p39, %p40
      %p42 = scmp.ne.s32.totalorder %s34, %s37
      %p43 = scmp.eq.s32.totalorder %s10, 0
      %p44 = por %p42, %p43
      %p45 = scmp.ne.s32.totalorder %s34, %s37
      %p46 = scmp.eq.s32.totalorder %s15, 1
      %p47 = por %p45, %p46
      %p48 = scmp.ne.s32.totalorder %s37, %s38
      %p49 = scmp.eq.s32.totalorder %s15, 0
      %p50 = por %p48, %p49
      %p51 = scmp.ne.s32.totalorder %s37, %s38
      %p52 = scmp.eq.s32.totalorder %s16, 1
      %p53 = por %p51, %p52
      %p55 = scmp.ne.s32.totalorder %s38, %s54
      %p56 = scmp.eq.s32.totalorder %s16, 0
      %p57 = por %p55, %p56
      %s58 = ssub.s32 %s17, %s29
      %p59 = scmp.eq.s32.totalorder %s58, 0
      %s61 = sadd.s32 %s60, 1
      %s62 = scalar_select %p59, %s60, %s61
      %p65 = pneg %p59
      %p66 = scmp.eq.s32.totalorder %s10, 1
      %p67 = por %p65, %p66
      %p68 = scmp.ne.s32.totalorder %s60, %s63
      %p69 = scmp.eq.s32.totalorder %s10, 0
      %p70 = por %p68, %p69
      %p71 = scmp.ne.s32.totalorder %s60, %s63
      %p72 = scmp.eq.s32.totalorder %s15, 1
      %p73 = por %p71, %p72
      %p74 = scmp.ne.s32.totalorder %s63, %s64
      %p75 = scmp.eq.s32.totalorder %s15, 0
      %p76 = por %p74, %p75
      %p77 = scmp.ne.s32.totalorder %s63, %s64
      %p78 = scmp.eq.s32.totalorder %s16, 1
      %p79 = por %p77, %p78
      %p81 = scmp.ne.s32.totalorder %s64, %s80
      %p82 = scmp.eq.s32.totalorder %s16, 0
      %p83 = por %p81, %p82
      %p84 = scmp.le.s32.totalorder 1, %s10
      %p85 = scmp.lt.s32.totalorder %s10, 3
      %p86 = pnand %p84, %p85
      %p87 = pneg %p86
      // Predicated region
      $region9: #{tpu_custom_call.1} parent=5 // pred_check
        _
      $region10: #{tpu_custom_call.1} parent=5 // pred_check_branch
        %89 = sbr.rel (%p86) target = $region12
      $region11: #{tpu_custom_call.1} parent=5 // pred_region
        %s90 = ssub.s32 %s10, 1
      $region12: #{tpu_custom_call.1} parent=5 // pred_fallthru
        _
      %p91 = scmp.lt.s32.totalorder %s10, 2
      // Predicated region
      $region13: #{tpu_custom_call.1} parent=5 // pred_check
        %p92 = pneg %p91
      $region14: #{tpu_custom_call.1} parent=5 // pred_check_branch
        %94 = sbr.rel (%p92) target = $region16
      $region15: #{tpu_custom_call.1} parent=5 // pred_region
        // Predicated region
        $region17: #{tpu_custom_call.1} parent=15 // pred_check
          %p95 = pneg %p44
        $region18: #{tpu_custom_call.1} parent=15 // pred_check_branch
          %97 = sbr.rel (%p95) target = $region20
        $region19: #{tpu_custom_call.1} parent=15 // pred_region
          %s98 = smul.u32 32, %s18
          %p99 = scmp.lt.s32.totalorder %s17, 1
          %s100 = scalar_select %p99, %s17, 1
          %p101 = scmp.lt.s32.totalorder %s98, 31
          %s102 = scalar_select %p101, %s98, 31
          %s103 = smul.addr %s100, 32
          %s104 = sadd.s32 %s102, %s103
          %s105 = smul.addr %s104, 8
          %s106 = scalar_lea.vmem %s0, %s105
          %s107 = smul.u32 32, %s18
        $region20: #{tpu_custom_call.1} parent=15 // pred_fallthru
          _
      $region16: #{tpu_custom_call.1} parent=5 // pred_fallthru
        _
      %p108 = scmp.le.s32.totalorder 1, %s10
      %p109 = scmp.lt.s32.totalorder %s10, 3
      %p110 = pnand %p108, %p109
      %p111 = pneg %p110
      // Predicated region
      $region21: #{tpu_custom_call.1} parent=5 // pred_check
        _
      $region22: #{tpu_custom_call.1} parent=5 // pred_check_branch
        %113 = sbr.rel (%p110) target = $region24
      $region23: #{tpu_custom_call.1} parent=5 // pred_region
        %s114 = ssub.s32 %s10, 1
        %s115 = smul.u32 32, %s20
        %p116 = scmp.lt.s32.totalorder %s19, 1
        %s117 = scalar_select %p116, %s19, 1
        %p118 = scmp.lt.s32.totalorder %s115, 31
        %s119 = scalar_select %p118, %s115, 31
        %s120 = smul.addr %s117, 32
        %s121 = sadd.s32 %s119, %s120
        %s122 = smul.addr %s121, 8
        %s123 = scalar_lea.vmem %s0, %s122
        %p124 = pneg %p50
        %p125 = pneg %p47
        %p126 = pneg %p76
        %p127 = pneg %p73
        %s128 = sand.u32 %s63, 1
        %s129 = scalar_lea.sflag [#allocation3], %s128
        %s130 = sand.u32 %s63, 1
        %s131 = scalar_lea.vmem [#allocation2], %s130
        %s132 = smul.u32 32, %s20
        %p133 = scmp.lt.s32.totalorder %s19, 1
        %s134 = scalar_select %p133, %s19, 1
        %p135 = scmp.lt.s32.totalorder %s132, 31
        %s136 = scalar_select %p135, %s132, 31
        %s137 = smul.addr %s134, 32
        %s138 = sadd.s32 %s136, %s137
        %s139 = smul.addr %s138, 8
        %s140 = scalar_lea.vmem %s0, %s139
        %s141 = smul.u32 32, %s20
        %p142 = scmp.eq.s32.totalorder %s20, 0
        // Predicated region
        $region25: #{tpu_custom_call.1} parent=23 // pred_check
          %p143 = pneg %p142
        $region26: #{tpu_custom_call.1} parent=23 // pred_check_branch
          %145 = sbr.rel (%p143) target = $region28
        $region27: #{tpu_custom_call.1} parent=23 // pred_region
          %vm146 = vcmask 253952
          %147 = vst.msk [vmem:[%s131] sm:$0x1] %vm146, 0.0
        $region28: #{tpu_custom_call.1} parent=23 // pred_fallthru
          _
        %v148 = vld [vmem:[%s140] sm:$0xff]
        %v149 = vld [vmem:[%s140 + $0x8] sm:$0xff]
        %v150 = vld [vmem:[%s140 + $0x10] sm:$0xff]
        %v151 = vld [vmem:[%s140 + $0x18] sm:$0xff]
        %v152 = vld [vmem:[%s140 + $0x20] sm:$0xff]
        %v153 = vld [vmem:[%s140 + $0x28] sm:$0xff]
        %v154 = vld [vmem:[%s140 + $0x30] sm:$0xff]
        %v155 = vld [vmem:[%s140 + $0x38] sm:$0xff]
        %v156 = vld [vmem:[%s140 + $0x40] sm:$0xff]
        %v157 = vld [vmem:[%s140 + $0x48] sm:$0xff]
        %v158 = vld [vmem:[%s140 + $0x50] sm:$0xff]
        %v159 = vld [vmem:[%s140 + $0x58] sm:$0xff]
        %v160 = vld [vmem:[%s140 + $0x60] sm:$0xff]
        %v161 = vld [vmem:[%s140 + $0x68] sm:$0xff]
        %v162 = vld [vmem:[%s140 + $0x70] sm:$0xff]
        %v163 = vld [vmem:[%s140 + $0x78] sm:$0xff]
        %v164 = vld [vmem:[%s140 + $0x80] sm:$0xff]
        %v165 = vld [vmem:[%s140 + $0x88] sm:$0xff]
        %v166 = vld [vmem:[%s140 + $0x90] sm:$0xff]
        %v167 = vld [vmem:[%s140 + $0x98] sm:$0xff]
        %v168 = vld [vmem:[%s140 + $0xa0] sm:$0xff]
        %v169 = vld [vmem:[%s140 + $0xa8] sm:$0xff]
        %v170 = vld [vmem:[%s140 + $0xb0] sm:$0xff]
        %v171 = vld [vmem:[%s140 + $0xb8] sm:$0xff]
        %v172 = vld [vmem:[%s140 + $0xc0] sm:$0xff]
        %v173 = vld [vmem:[%s140 + $0xc8] sm:$0xff]
        %v174 = vld [vmem:[%s140 + $0xd0] sm:$0xff]
        %v175 = vld [vmem:[%s140 + $0xd8] sm:$0xff]
        %v176 = vld [vmem:[%s140 + $0xe0] sm:$0xff]
        %v177 = vld [vmem:[%s140 + $0xe8] sm:$0xff]
        %v178 = vld [vmem:[%s140 + $0xf0] sm:$0xff]
        %v179 = vld [vmem:[%s140 + $0xf8] sm:$0xff]
        %v180 = vld [vmem:[%s131] sm:$0x1]
        %v181 = vmul.f32 %v148, %v148
        %v182 = vmul.f32 %v149, %v149
        %v183 = vmul.f32 %v150, %v150
        %v184 = vmul.f32 %v151, %v151
        %v185 = vmul.f32 %v152, %v152
        %v186 = vmul.f32 %v153, %v153
        %v187 = vmul.f32 %v154, %v154
        %v188 = vmul.f32 %v155, %v155
        %v189 = vmul.f32 %v156, %v156
        %v190 = vmul.f32 %v157, %v157
        %v191 = vmul.f32 %v158, %v158
        %v192 = vmul.f32 %v159, %v159
        %v193 = vmul.f32 %v160, %v160
        %v194 = vmul.f32 %v161, %v161
        %v195 = vmul.f32 %v162, %v162
        %v196 = vmul.f32 %v163, %v163
        %v197 = vmul.f32 %v164, %v164
        %v198 = vmul.f32 %v165, %v165
        %v199 = vmul.f32 %v166, %v166
        %v200 = vmul.f32 %v167, %v167
        %v201 = vmul.f32 %v168, %v168
        %v202 = vmul.f32 %v169, %v169
        %v203 = vmul.f32 %v170, %v170
        %v204 = vmul.f32 %v171, %v171
        %v205 = vmul.f32 %v172, %v172
        %v206 = vmul.f32 %v173, %v173
        %v207 = vmul.f32 %v174, %v174
        %v208 = vmul.f32 %v175, %v175
        %v209 = vmul.f32 %v176, %v176
        %v210 = vmul.f32 %v177, %v177
        %v211 = vmul.f32 %v178, %v178
        %v212 = vmul.f32 %v179, %v179
        %vm213 = vcmask 261120
        %v214 = vsel %vm213, %v181, 0.0
        %v215 = vsel %vm213, %v182, 0.0
        %v216 = vadd.f32 %v214, %v215
        %v217 = vsel %vm213, %v183, 0.0
        %v218 = vadd.f32 %v216, %v217
        %v219 = vsel %vm213, %v184, 0.0
        %v220 = vadd.f32 %v218, %v219
        %v221 = vsel %vm213, %v185, 0.0
        %v222 = vadd.f32 %v220, %v221
        %v223 = vsel %vm213, %v186, 0.0
        %v224 = vadd.f32 %v222, %v223
        %v225 = vsel %vm213, %v187, 0.0
        %v226 = vadd.f32 %v224, %v225
        %v227 = vsel %vm213, %v188, 0.0
        %v228 = vadd.f32 %v226, %v227
        %v229 = vsel %vm213, %v189, 0.0
        %v230 = vadd.f32 %v228, %v229
        %v231 = vsel %vm213, %v190, 0.0
        %v232 = vadd.f32 %v230, %v231
        %v233 = vsel %vm213, %v191, 0.0
        %v234 = vadd.f32 %v232, %v233
        %v235 = vsel %vm213, %v192, 0.0
        %v236 = vadd.f32 %v234, %v235
        %v237 = vsel %vm213, %v193, 0.0
        %v238 = vadd.f32 %v236, %v237
        %v239 = vsel %vm213, %v194, 0.0
        %v240 = vadd.f32 %v238, %v239
        %v241 = vsel %vm213, %v195, 0.0
        %v242 = vadd.f32 %v240, %v241
        %v243 = vsel %vm213, %v196, 0.0
        %v244 = vadd.f32 %v242, %v243
        %v245 = vsel %vm213, %v197, 0.0
        %v246 = vadd.f32 %v244, %v245
        %v247 = vsel %vm213, %v198, 0.0
        %v248 = vadd.f32 %v246, %v247
        %v249 = vsel %vm213, %v199, 0.0
        %v250 = vadd.f32 %v248, %v249
        %v251 = vsel %vm213, %v200, 0.0
        %v252 = vadd.f32 %v250, %v251
        %v253 = vsel %vm213, %v201, 0.0
        %v254 = vadd.f32 %v252, %v253
        %v255 = vsel %vm213, %v202, 0.0
        %v256 = vadd.f32 %v254, %v255
        %v257 = vsel %vm213, %v203, 0.0
        %v258 = vadd.f32 %v256, %v257
        %v259 = vsel %vm213, %v204, 0.0
        %v260 = vadd.f32 %v258, %v259
        %v261 = vsel %vm213, %v205, 0.0
        %v262 = vadd.f32 %v260, %v261
        %v263 = vsel %vm213, %v206, 0.0
        %v264 = vadd.f32 %v262, %v263
        %v265 = vsel %vm213, %v207, 0.0
        %v266 = vadd.f32 %v264, %v265
        %v267 = vsel %vm213, %v208, 0.0
        %v268 = vadd.f32 %v266, %v267
        %v269 = vsel %vm213, %v209, 0.0
        %v270 = vadd.f32 %v268, %v269
        %v271 = vsel %vm213, %v210, 0.0
        %v272 = vadd.f32 %v270, %v271
        %v273 = vsel %vm213, %v211, 0.0
        %v274 = vadd.f32 %v272, %v273
        %v275 = vsel %vm213, %v212, 0.0
        %v276 = vadd.f32 %v274, %v275
        %v277 = vrot.slane %v276, 4
        %v278 = vadd.f32 %v276, %v277
        %v279 = vrot.slane %v278, 2
        %v280 = vadd.f32 %v278, %v279
        %v281 = vrot.slane %v280, 1
        %v282 = vadd.f32 %v280, %v281
        %v283 = vadd.f32 %v180, %v282
        %vm284 = vcmask 253952
        %285 = vst.msk [vmem:[%s131] sm:$0x1] %vm284, %v283
        %s286 = sand.u32 %s63, 1
        %s287 = scalar_lea.sflag [#allocation3], %s286
        %s288 = sand.u32 %s63, 1
        %s289 = scalar_lea.vmem [#allocation2], %s288
        // Predicated region
        $region29: #{tpu_custom_call.1} parent=23 // pred_check
          %p290 = pneg %p73
        $region30: #{tpu_custom_call.1} parent=23 // pred_check_branch
          %292 = sbr.rel (%p290) target = $region32
        $region31: #{tpu_custom_call.1} parent=23 // pred_region
          %s294 = ssub.s32 16, 16
          %295 = vsyncadd %s287, %s294
          %s296 = smul.addr %s19, 16
          %s297 = scalar_lea.hbm %s1, %s296
          %s299 = sshll.u32 %s289, 4
          %s300 = int_to_ptr.vmem [resolvable:$true] %s299
          %302 = dma.vmem_to_hbm [thread:$0]  %s300, 16, %s297, %s287
        $region32: #{tpu_custom_call.1} parent=23 // pred_fallthru
          _
      $region24: #{tpu_custom_call.1} parent=5 // pred_fallthru
        _
      %p303 = scmp.le.s32.totalorder 2, %s10
      // Predicated region
      $region33: #{tpu_custom_call.1} parent=5 // pred_check
        %p304 = pneg %p303
      $region34: #{tpu_custom_call.1} parent=5 // pred_check_branch
        %306 = sbr.rel (%p304) target = $region36
      $region35: #{tpu_custom_call.1} parent=5 // pred_region
        %s307 = ssub.s32 %s10, 2
        // Predicated region
        $region37: #{tpu_custom_call.1} parent=35 // pred_check
          %p308 = pneg %p79
        $region38: #{tpu_custom_call.1} parent=35 // pred_check_branch
          %310 = sbr.rel (%p308) target = $region40
        $region39: #{tpu_custom_call.1} parent=35 // pred_region
          %s311 = sand.u32 %s64, 1
          %s312 = scalar_lea.sflag [#allocation3], %s311
          %s313 = sand.u32 %s64, 1
          %s314 = scalar_lea.vmem [#allocation2], %s313
          %315 = dma.done %s312, 16
        $region40: #{tpu_custom_call.1} parent=35 // pred_fallthru
          _
      $region36: #{tpu_custom_call.1} parent=5 // pred_fallthru
        _
    $region6: #{tpu_custom_call.1} parent=1 // loop_footer
      %s14 = sadd.s32 1, %s10
    $region7: #{tpu_custom_call.1} parent=1 // loop_footer_branch
      %9 = sbr.rel target = $region3
    $region8: #{tpu_custom_call.1} parent=1 // loop_exit
      _
    %316 = vsyncpa [#allocation3], 1
    %s317 = scalar_lea.sflag [#allocation3], 1
    %318 = vsyncpa %s317, 1

</llo_original>
